<compile_context>
chip_gen: v5e
topology: v5e:2x2
jax: 0.10.0
libtpu: 0.0.40
codegen_flags: <defaults>
</compile_context>

<pallas_src>
import functools

import jax
import jax.numpy as jnp
import numpy as np
from jax import lax
from jax.experimental import pallas as pl
from jax.experimental.pallas import tpu as pltpu


def _downsample_kernel(x_ref, w1r_ref, b1_ref, w2_ref, b2r_ref, o_ref, *, H, WC):
    """Fused DownSample forward for one batch element.

    x_ref  : (1, H+2, (W+2)*Cin)  zero-padded input, (w, c) flattened on lanes.
    w1r_ref: (3, (W+2)*Cin, 2*WC) conv1|resconv lowered (Toeplitz) weights per dy.
    b1_ref : (1, WC)              conv1 bias, tiled per output column.
    w2_ref : (3, WC, WC)          conv2 lowered (Toeplitz) weights per dy.
    b2r_ref: (1, WC)              b2 + br, pre-fused, tiled per output column.
    o_ref  : (1, H, WC)           lane-dense output, WC = W*Cout.
    """
    x = x_ref[0]                                        # (H+2, (W+2)*Cin)

    # ---- Stage 1: conv1 + resconv fused, one matmul per row offset dy. ----
    z = jnp.zeros((H, 2 * WC), jnp.float32)
    for dy in range(3):
        z = z + jnp.dot(x[dy:dy + H, :], w1r_ref[dy],
                        preferred_element_type=jnp.float32)
    y1 = jnp.maximum(z[:, :WC] + b1_ref[...], 0.0)      # relu(conv1(x) + b1)
    res = z[:, WC:]                                     # resconv(x) (bias fused later)

    # ---- Stage 2: conv2 over y1. Row shifts for dy = 0, 2 are done with tiny
    # shift matrices on the MXU (zero rows at the borders give the H-padding);
    # the W-padding is already folded into w2_ref. ----
    row = lax.broadcasted_iota(jnp.int32, (H, H), 0)
    col = lax.broadcasted_iota(jnp.int32, (H, H), 1)
    shift_up = (col == row - 1).astype(jnp.float32)     # picks y1[h-1]; 0 at h=0
    shift_dn = (col == row + 1).astype(jnp.float32)     # picks y1[h+1]; 0 at h=H-1

    acc = jnp.dot(y1, w2_ref[1], preferred_element_type=jnp.float32)
    acc = acc + jnp.dot(
        jnp.dot(shift_up, y1, preferred_element_type=jnp.float32),
        w2_ref[0], preferred_element_type=jnp.float32)
    acc = acc + jnp.dot(
        jnp.dot(shift_dn, y1, preferred_element_type=jnp.float32),
        w2_ref[2], preferred_element_type=jnp.float32)

    # out = relu(conv2(y1) + b2 + resconv(x) + br)
    out = jnp.maximum(acc + b2r_ref[...] + res, 0.0)    # (H, WC), lane-dense
    o_ref[0] = out.astype(o_ref.dtype)


def _lower_conv_weight(w_hwio, sel):
    """(3,3,Ci,Co), sel (3, X, W) -> (3, X*Ci, W*Co) Toeplitz slabs (one per dy).

    T[dy, x*Ci + c, w*Co + o] = sum_dx w[dy, dx, c, o] * sel[dx, x, w]
    """
    t = jnp.einsum("abco,bxw->axcwo", w_hwio, sel)
    _, X, Ci, Wd, Co = t.shape
    return t.reshape(3, X * Ci, Wd * Co)


def downsample_pallas(x_nchw, params):
    """Forward pass of DownSample. x_nchw: (N, Cin, H, W) float32."""
    w1, b1, w2, b2, wr, br = (params[k] for k in
                              ("w1", "b1", "w2", "b2", "wr", "br"))
    N, Cin, H, W = x_nchw.shape
    Cout = w1.shape[-1]
    Hp, Wp = H + 2, W + 2
    WC = W * Cout

    # Input: NCHW -> NHWC -> zero-pad H/W by 1 -> flatten (w, c) onto lanes.
    x_nhwc = jnp.transpose(x_nchw, (0, 2, 3, 1))
    x_pad = jnp.pad(x_nhwc, ((0, 0), (1, 1), (1, 1), (0, 0)))
    x_flat = x_pad.reshape(N, Hp, Wp * Cin)

    # Column-offset selectors (numpy constants, built once per trace).
    dxs = np.arange(3)
    # stage 1 input is W-padded: column x of x_pad feeds output w when x == w + dx
    sel1 = (np.arange(Wp)[None, :, None]
            == (np.arange(W)[None, None, :] + dxs[:, None, None])
            ).astype(np.float32)                         # (3, W+2, W)
    # stage 2 input (y1) is unpadded: column x feeds output w when x == w + dx - 1
    sel2 = (np.arange(W)[None, :, None]
            == (np.arange(W)[None, None, :] + dxs[:, None, None] - 1)
            ).astype(np.float32)                         # (3, W, W)

    w1_t = _lower_conv_weight(w1, sel1)                  # (3, Wp*Cin, WC)
    wr_t = _lower_conv_weight(wr, sel1)                  # (3, Wp*Cin, WC)
    w1r_t = jnp.concatenate([w1_t, wr_t], axis=-1)       # (3, Wp*Cin, 2*WC)
    w2_t = _lower_conv_weight(w2, sel2)                  # (3, WC, WC)

    b1_d = jnp.tile(b1, W).reshape(1, WC)
    b2r_d = jnp.tile(b2 + br, W).reshape(1, WC)          # fused b2 + br

    kernel = functools.partial(_downsample_kernel, H=H, WC=WC)

    out_flat = pl.pallas_call(
        kernel,
        out_shape=jax.ShapeDtypeStruct((N, H, WC), jnp.float32),
        grid_spec=pltpu.PrefetchScalarGridSpec(
            num_scalar_prefetch=0,
            grid=(N,),
            in_specs=[
                pl.BlockSpec((1, Hp, Wp * Cin), lambda n: (n, 0, 0)),
                pl.BlockSpec((3, Wp * Cin, 2 * WC), lambda n: (0, 0, 0)),
                pl.BlockSpec((1, WC), lambda n: (0, 0)),
                pl.BlockSpec((3, WC, WC), lambda n: (0, 0, 0)),
                pl.BlockSpec((1, WC), lambda n: (0, 0)),
            ],
            out_specs=pl.BlockSpec((1, H, WC), lambda n: (n, 0, 0)),
        ),
        compiler_params=pltpu.CompilerParams(
            dimension_semantics=("parallel",),
            vmem_limit_bytes=32 * 1024 * 1024),
    )(x_flat, w1r_t, b1_d, w2_t, b2r_d)

    out_nhwc = out_flat.reshape(N, H, W, Cout)
    return jnp.transpose(out_nhwc, (0, 3, 1, 2))         # back to NCHW


def downsample_ref(x_nchw, params):
    """Pure-JAX reference (lax.conv) for correctness checking."""
    def conv(x, w, b):  # x NHWC, w HWIO
        y = lax.conv_general_dilated(
            x, w, window_strides=(1, 1), padding=((1, 1), (1, 1)),
            dimension_numbers=("NHWC", "HWIO", "NHWC"))
        return y + b.reshape(1, 1, 1, -1)

    x = jnp.transpose(x_nchw, (0, 2, 3, 1))
    r = conv(x, params["wr"], params["br"])
    y = jax.nn.relu(conv(x, params["w1"], params["b1"]))
    y = conv(y, params["w2"], params["b2"]) + r
    y = jax.nn.relu(y)
    return jnp.transpose(y, (0, 3, 1, 2))


def init_params(key, cin, cout):
    ks = jax.random.split(key, 6)
    scale = 0.1
    return {
        "w1": scale * jax.random.normal(ks[0], (3, 3, cin, cout), jnp.float32),
        "b1": scale * jax.random.normal(ks[1], (cout,), jnp.float32),
        "w2": scale * jax.random.normal(ks[2], (3, 3, cout, cout), jnp.float32),
        "b2": scale * jax.random.normal(ks[3], (cout,), jnp.float32),
        "wr": scale * jax.random.normal(ks[4], (3, 3, cin, cout), jnp.float32),
        "br": scale * jax.random.normal(ks[5], (cout,), jnp.float32),
    }


if __name__ == "__main__":
    key = jax.random.PRNGKey(0)
    kx, kp = jax.random.split(key)

    N, Cin, Cout, H, W = 2, 4, 8, 16, 16
    x = jax.random.normal(kx, (N, Cin, H, W), jnp.float32)
    params = init_params(kp, Cin, Cout)

    out = jax.block_until_ready(downsample_pallas(x, params))
    ref = jax.block_until_ready(downsample_ref(x, params))
    np.testing.assert_allclose(np.asarray(out), np.asarray(ref),
                               rtol=1e-5, atol=1e-5)

    print("KERNEL_OK")
</pallas_src>

<mosaic_0001>
module attributes {stable_mosaic.version = 11 : i64} {
  func.func @_downsample_kernel(%arg0: i32, %arg1: memref<1x18x72xf32, #tpu.memory_space<vmem>>, %arg2: memref<3x72x256xf32, #tpu.memory_space<vmem>>, %arg3: memref<1x128xf32, #tpu.memory_space<vmem>>, %arg4: memref<3x128x128xf32, #tpu.memory_space<vmem>>, %arg5: memref<1x128xf32, #tpu.memory_space<vmem>>, %arg6: memref<1x16x128xf32, #tpu.memory_space<vmem>>) attributes {dimension_semantics = [#tpu.dimension_semantics<parallel>], iteration_bounds = array<i64: 2>, scalar_prefetch = 0 : i64, scratch_operands = 0 : i64, tpu.core_type = #tpu.core_type<tc>, window_params = [{transform_indices = @transform_0, window_bounds = array<i64: 1, 18, 72>}, {pipeline_mode = #tpu.pipeline_mode<synchronous>, transform_indices = @transform_1, window_bounds = array<i64: 3, 72, 256>}, {pipeline_mode = #tpu.pipeline_mode<synchronous>, transform_indices = @transform_2, window_bounds = array<i64: 1, 128>}, {pipeline_mode = #tpu.pipeline_mode<synchronous>, transform_indices = @transform_3, window_bounds = array<i64: 3, 128, 128>}, {pipeline_mode = #tpu.pipeline_mode<synchronous>, transform_indices = @transform_4, window_bounds = array<i64: 1, 128>}, {transform_indices = @transform_5, window_bounds = array<i64: 1, 16, 128>}]} {
    %c0 = arith.constant 0 : index
    %c0_0 = arith.constant 0 : index
    %c0_1 = arith.constant 0 : index
    %0 = vector.load %arg1[%c0, %c0_0, %c0_1] : memref<1x18x72xf32, #tpu.memory_space<vmem>>, vector<1x18x72xf32>
    %1 = vector.shape_cast %0 : vector<1x18x72xf32> to vector<18x72xf32>
    %cst = arith.constant 0.000000e+00 : f32
    %2 = vector.broadcast %cst : f32 to vector<16x256xf32>
    %3 = vector.extract_strided_slice %1 {offsets = [0, 0], sizes = [16, 72], strides = [1, 1]} : vector<18x72xf32> to vector<16x72xf32>
    %c0_2 = arith.constant 0 : index
    %c0_3 = arith.constant 0 : index
    %c0_4 = arith.constant 0 : index
    %4 = vector.load %arg2[%c0_2, %c0_3, %c0_4] : memref<3x72x256xf32, #tpu.memory_space<vmem>>, vector<1x72x256xf32>
    %5 = vector.shape_cast %4 : vector<1x72x256xf32> to vector<72x256xf32>
    %cst_5 = arith.constant dense<0.000000e+00> : vector<16x256xf32>
    %6 = tpu.matmul %3, %5, %cst_5 {dimension_numbers = #tpu.dot_dimension_numbers<[1], [0], [0], [1], [0, 0, 1, 1], [], []>} : vector<16x72xf32>, vector<72x256xf32>, vector<16x256xf32> -> vector<16x256xf32>
    %7 = arith.addf %2, %6 : vector<16x256xf32>
    %8 = vector.extract_strided_slice %1 {offsets = [1, 0], sizes = [16, 72], strides = [1, 1]} : vector<18x72xf32> to vector<16x72xf32>
    %c1 = arith.constant 1 : index
    %c0_6 = arith.constant 0 : index
    %c0_7 = arith.constant 0 : index
    %9 = vector.load %arg2[%c1, %c0_6, %c0_7] : memref<3x72x256xf32, #tpu.memory_space<vmem>>, vector<1x72x256xf32>
    %10 = vector.shape_cast %9 : vector<1x72x256xf32> to vector<72x256xf32>
    %cst_8 = arith.constant dense<0.000000e+00> : vector<16x256xf32>
    %11 = tpu.matmul %8, %10, %cst_8 {dimension_numbers = #tpu.dot_dimension_numbers<[1], [0], [0], [1], [0, 0, 1, 1], [], []>} : vector<16x72xf32>, vector<72x256xf32>, vector<16x256xf32> -> vector<16x256xf32>
    %12 = arith.addf %7, %11 : vector<16x256xf32>
    %13 = vector.extract_strided_slice %1 {offsets = [2, 0], sizes = [16, 72], strides = [1, 1]} : vector<18x72xf32> to vector<16x72xf32>
    %c2 = arith.constant 2 : index
    %c0_9 = arith.constant 0 : index
    %c0_10 = arith.constant 0 : index
    %14 = vector.load %arg2[%c2, %c0_9, %c0_10] : memref<3x72x256xf32, #tpu.memory_space<vmem>>, vector<1x72x256xf32>
    %15 = vector.shape_cast %14 : vector<1x72x256xf32> to vector<72x256xf32>
    %cst_11 = arith.constant dense<0.000000e+00> : vector<16x256xf32>
    %16 = tpu.matmul %13, %15, %cst_11 {dimension_numbers = #tpu.dot_dimension_numbers<[1], [0], [0], [1], [0, 0, 1, 1], [], []>} : vector<16x72xf32>, vector<72x256xf32>, vector<16x256xf32> -> vector<16x256xf32>
    %17 = arith.addf %12, %16 : vector<16x256xf32>
    %18 = vector.extract_strided_slice %17 {offsets = [0, 0], sizes = [16, 128], strides = [1, 1]} : vector<16x256xf32> to vector<16x128xf32>
    %c0_12 = arith.constant 0 : index
    %c0_13 = arith.constant 0 : index
    %19 = vector.load %arg3[%c0_12, %c0_13] : memref<1x128xf32, #tpu.memory_space<vmem>>, vector<1x128xf32>
    %20 = vector.broadcast %19 : vector<1x128xf32> to vector<16x128xf32>
    %21 = arith.addf %18, %20 : vector<16x128xf32>
    %cst_14 = arith.constant 0.000000e+00 : f32
    %22 = vector.broadcast %cst_14 : f32 to vector<16x128xf32>
    %23 = arith.maximumf %21, %22 : vector<16x128xf32>
    %24 = vector.extract_strided_slice %17 {offsets = [0, 128], sizes = [16, 128], strides = [1, 1]} : vector<16x256xf32> to vector<16x128xf32>
    %25 = tpu.iota {dimensions = array<i32: 0>} : vector<16x16xi32>
    %26 = tpu.iota {dimensions = array<i32: 1>} : vector<16x16xi32>
    %c1_i32 = arith.constant 1 : i32
    %27 = vector.broadcast %c1_i32 : i32 to vector<16x16xi32>
    %28 = arith.subi %25, %27 : vector<16x16xi32>
    %29 = arith.cmpi eq, %26, %28 : vector<16x16xi32>
    %30 = arith.extui %29 : vector<16x16xi1> to vector<16x16xi32>
    %31 = arith.sitofp %30 : vector<16x16xi32> to vector<16x16xf32>
    %c1_i32_15 = arith.constant 1 : i32
    %32 = vector.broadcast %c1_i32_15 : i32 to vector<16x16xi32>
    %33 = arith.addi %25, %32 : vector<16x16xi32>
    %34 = arith.cmpi eq, %26, %33 : vector<16x16xi32>
    %35 = arith.extui %34 : vector<16x16xi1> to vector<16x16xi32>
    %36 = arith.sitofp %35 : vector<16x16xi32> to vector<16x16xf32>
    %c1_16 = arith.constant 1 : index
    %c0_17 = arith.constant 0 : index
    %c0_18 = arith.constant 0 : index
    %37 = vector.load %arg4[%c1_16, %c0_17, %c0_18] : memref<3x128x128xf32, #tpu.memory_space<vmem>>, vector<1x128x128xf32>
    %38 = vector.shape_cast %37 : vector<1x128x128xf32> to vector<128x128xf32>
    %cst_19 = arith.constant dense<0.000000e+00> : vector<16x128xf32>
    %39 = tpu.matmul %23, %38, %cst_19 {dimension_numbers = #tpu.dot_dimension_numbers<[1], [0], [0], [1], [0, 0, 1, 1], [], []>} : vector<16x128xf32>, vector<128x128xf32>, vector<16x128xf32> -> vector<16x128xf32>
    %cst_20 = arith.constant dense<0.000000e+00> : vector<16x128xf32>
    %40 = tpu.matmul %31, %23, %cst_20 {dimension_numbers = #tpu.dot_dimension_numbers<[1], [0], [0], [1], [0, 0, 1, 1], [], []>} : vector<16x16xf32>, vector<16x128xf32>, vector<16x128xf32> -> vector<16x128xf32>
    %c0_21 = arith.constant 0 : index
    %c0_22 = arith.constant 0 : index
    %c0_23 = arith.constant 0 : index
    %41 = vector.load %arg4[%c0_21, %c0_22, %c0_23] : memref<3x128x128xf32, #tpu.memory_space<vmem>>, vector<1x128x128xf32>
    %42 = vector.shape_cast %41 : vector<1x128x128xf32> to vector<128x128xf32>
    %cst_24 = arith.constant dense<0.000000e+00> : vector<16x128xf32>
    %43 = tpu.matmul %40, %42, %cst_24 {dimension_numbers = #tpu.dot_dimension_numbers<[1], [0], [0], [1], [0, 0, 1, 1], [], []>} : vector<16x128xf32>, vector<128x128xf32>, vector<16x128xf32> -> vector<16x128xf32>
    %44 = arith.addf %39, %43 : vector<16x128xf32>
    %cst_25 = arith.constant dense<0.000000e+00> : vector<16x128xf32>
    %45 = tpu.matmul %36, %23, %cst_25 {dimension_numbers = #tpu.dot_dimension_numbers<[1], [0], [0], [1], [0, 0, 1, 1], [], []>} : vector<16x16xf32>, vector<16x128xf32>, vector<16x128xf32> -> vector<16x128xf32>
    %c2_26 = arith.constant 2 : index
    %c0_27 = arith.constant 0 : index
    %c0_28 = arith.constant 0 : index
    %46 = vector.load %arg4[%c2_26, %c0_27, %c0_28] : memref<3x128x128xf32, #tpu.memory_space<vmem>>, vector<1x128x128xf32>
    %47 = vector.shape_cast %46 : vector<1x128x128xf32> to vector<128x128xf32>
    %cst_29 = arith.constant dense<0.000000e+00> : vector<16x128xf32>
    %48 = tpu.matmul %45, %47, %cst_29 {dimension_numbers = #tpu.dot_dimension_numbers<[1], [0], [0], [1], [0, 0, 1, 1], [], []>} : vector<16x128xf32>, vector<128x128xf32>, vector<16x128xf32> -> vector<16x128xf32>
    %49 = arith.addf %44, %48 : vector<16x128xf32>
    %c0_30 = arith.constant 0 : index
    %c0_31 = arith.constant 0 : index
    %50 = vector.load %arg5[%c0_30, %c0_31] : memref<1x128xf32, #tpu.memory_space<vmem>>, vector<1x128xf32>
    %51 = vector.broadcast %50 : vector<1x128xf32> to vector<16x128xf32>
    %52 = arith.addf %49, %51 : vector<16x128xf32>
    %53 = arith.addf %52, %24 : vector<16x128xf32>
    %cst_32 = arith.constant 0.000000e+00 : f32
    %54 = vector.broadcast %cst_32 : f32 to vector<16x128xf32>
    %55 = arith.maximumf %53, %54 : vector<16x128xf32>
    %c0_33 = arith.constant 0 : index
    %c0_34 = arith.constant 0 : index
    %c0_35 = arith.constant 0 : index
    %56 = vector.load %arg6[%c0_33, %c0_34, %c0_35] : memref<1x16x128xf32, #tpu.memory_space<vmem>>, vector<1x16x128xf32>
    %57 = vector.shape_cast %56 : vector<1x16x128xf32> to vector<16x128xf32>
    %58 = vector.shape_cast %55 : vector<16x128xf32> to vector<1x16x128xf32>
    tpu.vector_store %arg6[%c0_33, %c0_34, %c0_35], %58 {strides = array<i32>} : memref<1x16x128xf32, #tpu.memory_space<vmem>>, vector<1x16x128xf32>,
    return
  }
  func.func @transform_0(%arg0: i32) -> (i32, i32, i32) {
    %c0_i32 = arith.constant 0 : i32
    %c0_i32_0 = arith.constant 0 : i32
    %c0_i32_1 = arith.constant 0 : i32
    return %arg0, %c0_i32, %c0_i32_0 : i32, i32, i32
  }
  func.func @transform_1(%arg0: i32) -> (i32, i32, i32) {
    %c0_i32 = arith.constant 0 : i32
    %c0_i32_0 = arith.constant 0 : i32
    %c0_i32_1 = arith.constant 0 : i32
    %c0_i32_2 = arith.constant 0 : i32
    return %c0_i32, %c0_i32_0, %c0_i32_1 : i32, i32, i32
  }
  func.func @transform_2(%arg0: i32) -> (i32, i32) {
    %c0_i32 = arith.constant 0 : i32
    %c0_i32_0 = arith.constant 0 : i32
    %c0_i32_1 = arith.constant 0 : i32
    return %c0_i32, %c0_i32_0 : i32, i32
  }
  func.func @transform_3(%arg0: i32) -> (i32, i32, i32) {
    %c0_i32 = arith.constant 0 : i32
    %c0_i32_0 = arith.constant 0 : i32
    %c0_i32_1 = arith.constant 0 : i32
    %c0_i32_2 = arith.constant 0 : i32
    return %c0_i32, %c0_i32_0, %c0_i32_1 : i32, i32, i32
  }
  func.func @transform_4(%arg0: i32) -> (i32, i32) {
    %c0_i32 = arith.constant 0 : i32
    %c0_i32_0 = arith.constant 0 : i32
    %c0_i32_1 = arith.constant 0 : i32
    return %c0_i32, %c0_i32_0 : i32, i32
  }
  func.func @transform_5(%arg0: i32) -> (i32, i32, i32) {
    %c0_i32 = arith.constant 0 : i32
    %c0_i32_0 = arith.constant 0 : i32
    %c0_i32_1 = arith.constant 0 : i32
    return %arg0, %c0_i32, %c0_i32_0 : i32, i32, i32
  }
}

</mosaic_0001>

<llo_original>
// kernel: tpu_custom_call.1
$region0: #{tpu_custom_call.1}
  #allocation0 [shape = 'u32[]', space=smem, size = 0x4, offset = 0x4, fixed_abs, tag = 'smem constant byte address 0x4 - core index']
  #allocation1 [shape = 'u32[72,128]{1,0:T(1,128)}', space=vmem, size = 0x9000, scoped, tag = 'internal scratch']
  %s0 = inlined_call_operand.vmem [shape: f32[2,18,72], index: 0, kind: input, shape index: {}]
  %s1 = inlined_call_operand.hbm [shape: f32[3,72,256], index: 1, kind: input, shape index: {}]
  %s2 = inlined_call_operand.vmem [shape: f32[1,128], index: 2, kind: input, shape index: {}]
  %s3 = inlined_call_operand.hbm [shape: f32[3,128,128], index: 3, kind: input, shape index: {}]
  %s4 = inlined_call_operand.vmem [shape: f32[1,128], index: 4, kind: input, shape index: {}]
  %s5 = inlined_call_operand.hbm [shape: f32[2,16,128], index: 5, kind: output, shape index: {}]
  %s6 = sld [smem:[#allocation0]]
  $region61: #{tpu_custom_call.1} parent=0
    _
  %s8 = ssub.s32 1, %s6
  %s9 = scalar_select 0, %s8, %s6
  $region1: #{tpu_custom_call.1} parent=0
    #allocation2 [shape = 'u8[221184]{0}', space=vmem, size = 0x36000, scoped, tag = 'input window, operand 1, single buffered']
    #allocation3 [shape = 's32[2]{0}', space=sflag, size = 0x8, scoped, tag = 'scoped memory for tpu_custom_call.1']
    #allocation4 [shape = 's32[2]{0}', space=sflag, size = 0x8, scoped, tag = 'scoped memory for tpu_custom_call.1']
    #allocation5 [shape = 'u8[196608]{0}', space=vmem, size = 0x30000, scoped, tag = 'input window, operand 3, single buffered']
    #allocation6 [shape = 's32[1]{0}', space=sflag, size = 0x4, scoped, tag = 'scoped memory for tpu_custom_call.1']
    #allocation7 [shape = 'u8[16384]{0}', space=vmem, size = 0x4000, scoped, tag = 'output window, operand 0']
    %10 = vsyncpa [#allocation3], 0
    %11 = vsyncpa [#allocation6], 0
    %12 = vsyncpa [#allocation4], 0
    %s13 = scalar_lea.sflag [#allocation4], 1
    %14 = vsyncpa %s13, 0
    loop: start=0, step=1, limit=4
    $region2: #{tpu_custom_call.1} parent=1 // loop_pre_header
      _
    $region3: #{tpu_custom_call.1} parent=1 // loop_header
      %s16 = sphi 0, %s20
      %p17 = scmp.ge.s32.totalorder %s16, 4
      %s26 = sphi 0, %s28
      %s29 = sphi 0, %s26
      %s30 = sphi 0, %s29
      %s46 = sphi 0, %s30
      %s50 = sphi 0, %s50
      %s52 = sphi 0, %s50
      %s53 = sphi 0, %s52
      %s67 = sphi 0, %s53
      %s71 = sphi 0, %s71
      %s73 = sphi 0, %s71
      %s74 = sphi 0, %s73
      %s88 = sphi 0, %s74
      %s92 = sphi 0, %s92
      %s94 = sphi 0, %s92
      %s95 = sphi 0, %s94
      %s109 = sphi 0, %s95
      %s113 = sphi 0, %s113
      %s115 = sphi 0, %s113
      %s116 = sphi 0, %s115
      %s130 = sphi 0, %s116
      %s136 = sphi 0, %s138
      %s139 = sphi 0, %s136
      %s140 = sphi 0, %s139
      %s156 = sphi 0, %s140
    $region4: #{tpu_custom_call.1} parent=1 // loop_header_branch
      %19 = sbr.rel (%p17) target = $region8
    $region5: #{tpu_custom_call.1} parent=1 // loop_body
      %s21 = ssub.s32 %s16, 1
      %s22 = ssub.s32 %s16, 2
      %s23 = sadd.s32 %s16, 1
      %s24 = ssub.s32 %s16, %s23
      %p25 = scmp.eq.s32.totalorder %s24, 0
      %s27 = sadd.s32 %s26, 1
      %s28 = scalar_select %p25, %s26, %s27
      %p31 = pneg %p25
      %p32 = scmp.eq.s32.totalorder %s16, 1
      %p33 = por %p31, %p32
      %p34 = scmp.ne.s32.totalorder %s26, %s29
      %p35 = scmp.eq.s32.totalorder %s16, 0
      %p36 = por %p34, %p35
      %p37 = scmp.ne.s32.totalorder %s26, %s29
      %p38 = scmp.eq.s32.totalorder %s21, 1
      %p39 = por %p37, %p38
      %p40 = scmp.ne.s32.totalorder %s29, %s30
      %p41 = scmp.eq.s32.totalorder %s21, 0
      %p42 = por %p40, %p41
      %p43 = scmp.ne.s32.totalorder %s29, %s30
      %p44 = scmp.eq.s32.totalorder %s22, 1
      %p45 = por %p43, %p44
      %p47 = scmp.ne.s32.totalorder %s30, %s46
      %p48 = scmp.eq.s32.totalorder %s22, 0
      %p49 = por %p47, %p48
      %s51 = sadd.s32 %s50, 1
      %p54 = scmp.eq.s32.totalorder %s16, 1
      %p55 = scmp.ne.s32.totalorder %s50, %s52
      %p56 = scmp.eq.s32.totalorder %s16, 0
      %p57 = por %p55, %p56
      %p58 = scmp.ne.s32.totalorder %s50, %s52
      %p59 = scmp.eq.s32.totalorder %s21, 1
      %p60 = por %p58, %p59
      %p61 = scmp.ne.s32.totalorder %s52, %s53
      %p62 = scmp.eq.s32.totalorder %s21, 0
      %p63 = por %p61, %p62
      %p64 = scmp.ne.s32.totalorder %s52, %s53
      %p65 = scmp.eq.s32.totalorder %s22, 1
      %p66 = por %p64, %p65
      %p68 = scmp.ne.s32.totalorder %s53, %s67
      %p69 = scmp.eq.s32.totalorder %s22, 0
      %p70 = por %p68, %p69
      %s72 = sadd.s32 %s71, 1
      %p75 = scmp.eq.s32.totalorder %s16, 1
      %p76 = scmp.ne.s32.totalorder %s71, %s73
      %p77 = scmp.eq.s32.totalorder %s16, 0
      %p78 = por %p76, %p77
      %p79 = scmp.ne.s32.totalorder %s71, %s73
      %p80 = scmp.eq.s32.totalorder %s21, 1
      %p81 = por %p79, %p80
      %p82 = scmp.ne.s32.totalorder %s73, %s74
      %p83 = scmp.eq.s32.totalorder %s21, 0
      %p84 = por %p82, %p83
      %p85 = scmp.ne.s32.totalorder %s73, %s74
      %p86 = scmp.eq.s32.totalorder %s22, 1
      %p87 = por %p85, %p86
      %p89 = scmp.ne.s32.totalorder %s74, %s88
      %p90 = scmp.eq.s32.totalorder %s22, 0
      %p91 = por %p89, %p90
      %s93 = sadd.s32 %s92, 1
      %p96 = scmp.eq.s32.totalorder %s16, 1
      %p97 = scmp.ne.s32.totalorder %s92, %s94
      %p98 = scmp.eq.s32.totalorder %s16, 0
      %p99 = por %p97, %p98
      %p100 = scmp.ne.s32.totalorder %s92, %s94
      %p101 = scmp.eq.s32.totalorder %s21, 1
      %p102 = por %p100, %p101
      %p103 = scmp.ne.s32.totalorder %s94, %s95
      %p104 = scmp.eq.s32.totalorder %s21, 0
      %p105 = por %p103, %p104
      %p106 = scmp.ne.s32.totalorder %s94, %s95
      %p107 = scmp.eq.s32.totalorder %s22, 1
      %p108 = por %p106, %p107
      %p110 = scmp.ne.s32.totalorder %s95, %s109
      %p111 = scmp.eq.s32.totalorder %s22, 0
      %p112 = por %p110, %p111
      %s114 = sadd.s32 %s113, 1
      %p117 = scmp.eq.s32.totalorder %s16, 1
      %p118 = scmp.ne.s32.totalorder %s113, %s115
      %p119 = scmp.eq.s32.totalorder %s16, 0
      %p120 = por %p118, %p119
      %p121 = scmp.ne.s32.totalorder %s113, %s115
      %p122 = scmp.eq.s32.totalorder %s21, 1
      %p123 = por %p121, %p122
      %p124 = scmp.ne.s32.totalorder %s115, %s116
      %p125 = scmp.eq.s32.totalorder %s21, 0
      %p126 = por %p124, %p125
      %p127 = scmp.ne.s32.totalorder %s115, %s116
      %p128 = scmp.eq.s32.totalorder %s22, 1
      %p129 = por %p127, %p128
      %p131 = scmp.ne.s32.totalorder %s116, %s130
      %p132 = scmp.eq.s32.totalorder %s22, 0
      %p133 = por %p131, %p132
      %s134 = ssub.s32 %s16, %s23
      %p135 = scmp.eq.s32.totalorder %s134, 0
      %s137 = sadd.s32 %s136, 1
      %s138 = scalar_select %p135, %s136, %s137
      %p141 = pneg %p135
      %p142 = scmp.eq.s32.totalorder %s16, 1
      %p143 = por %p141, %p142
      %p144 = scmp.ne.s32.totalorder %s136, %s139
      %p145 = scmp.eq.s32.totalorder %s16, 0
      %p146 = por %p144, %p145
      %p147 = scmp.ne.s32.totalorder %s136, %s139
      %p148 = scmp.eq.s32.totalorder %s21, 1
      %p149 = por %p147, %p148
      %p150 = scmp.ne.s32.totalorder %s139, %s140
      %p151 = scmp.eq.s32.totalorder %s21, 0
      %p152 = por %p150, %p151
      %p153 = scmp.ne.s32.totalorder %s139, %s140
      %p154 = scmp.eq.s32.totalorder %s22, 1
      %p155 = por %p153, %p154
      %p157 = scmp.ne.s32.totalorder %s140, %s156
      %p158 = scmp.eq.s32.totalorder %s22, 0
      %p159 = por %p157, %p158
      %p160 = scmp.le.s32.totalorder 1, %s16
      %p161 = scmp.lt.s32.totalorder %s16, 3
      %p162 = pnand %p160, %p161
      %p163 = pneg %p162
      // Predicated region
      $region9: #{tpu_custom_call.1} parent=5 // pred_check
        _
      $region10: #{tpu_custom_call.1} parent=5 // pred_check_branch
        %165 = sbr.rel (%p162) target = $region12
      $region11: #{tpu_custom_call.1} parent=5 // pred_region
        %s166 = ssub.s32 %s16, 1
        // Predicated region
        $region13: #{tpu_custom_call.1} parent=11 // pred_check
          %p167 = pneg %p63
        $region14: #{tpu_custom_call.1} parent=11 // pred_check_branch
          %169 = sbr.rel (%p167) target = $region16
        $region15: #{tpu_custom_call.1} parent=11 // pred_region
          %171 = vsyncadd [#allocation3], 0
          %s172 = sshll.u32 %s1, 4
          %s173 = int_to_ptr.hbm [resolvable:$true] %s172
          %s174 = sshll.u32 [#allocation2], 4
          %s175 = int_to_ptr.vmem [resolvable:$true] %s174
          %180 = dma.hbm_to_vmem [thread:$0]  %s173, 6912, %s175, [#allocation3], 256, 256, 16
        $region16: #{tpu_custom_call.1} parent=11 // pred_fallthru
          _
        // Predicated region
        $region17: #{tpu_custom_call.1} parent=11 // pred_check
          %p181 = pneg %p84
        $region18: #{tpu_custom_call.1} parent=11 // pred_check_branch
          %183 = sbr.rel (%p181) target = $region20
        $region19: #{tpu_custom_call.1} parent=11 // pred_region
          _
        $region20: #{tpu_custom_call.1} parent=11 // pred_fallthru
          _
        // Predicated region
        $region21: #{tpu_custom_call.1} parent=11 // pred_check
          %p184 = pneg %p105
        $region22: #{tpu_custom_call.1} parent=11 // pred_check_branch
          %186 = sbr.rel (%p184) target = $region24
        $region23: #{tpu_custom_call.1} parent=11 // pred_region
          %188 = vsyncadd [#allocation6], 0
          %s189 = sshll.u32 %s3, 4
          %s190 = int_to_ptr.hbm [resolvable:$true] %s189
          %s191 = sshll.u32 [#allocation5], 4
          %s192 = int_to_ptr.vmem [resolvable:$true] %s191
          %197 = dma.hbm_to_vmem [thread:$0]  %s190, 6144, %s192, [#allocation6], 128, 128, 8
        $region24: #{tpu_custom_call.1} parent=11 // pred_fallthru
          _
        // Predicated region
        $region25: #{tpu_custom_call.1} parent=11 // pred_check
          %p198 = pneg %p126
        $region26: #{tpu_custom_call.1} parent=11 // pred_check_branch
          %200 = sbr.rel (%p198) target = $region28
        $region27: #{tpu_custom_call.1} parent=11 // pred_region
          _
        $region28: #{tpu_custom_call.1} parent=11 // pred_fallthru
          _
      $region12: #{tpu_custom_call.1} parent=5 // pred_fallthru
        _
      %p201 = scmp.lt.s32.totalorder %s16, 2
      // Predicated region
      $region29: #{tpu_custom_call.1} parent=5 // pred_check
        %p202 = pneg %p201
      $region30: #{tpu_custom_call.1} parent=5 // pred_check_branch
        %204 = sbr.rel (%p202) target = $region32
      $region31: #{tpu_custom_call.1} parent=5 // pred_region
        // Predicated region
        $region33: #{tpu_custom_call.1} parent=31 // pred_check
          %p205 = pneg %p36
        $region34: #{tpu_custom_call.1} parent=31 // pred_check_branch
          %207 = sbr.rel (%p205) target = $region36
        $region35: #{tpu_custom_call.1} parent=31 // pred_region
          %p208 = scmp.lt.s32.totalorder %s16, 1
          %s209 = scalar_select %p208, %s16, 1
          %s210 = smul.addr %s209, 3
          %s211 = smul.addr %s210, 8
          %s212 = scalar_lea.vmem %s0, %s211
        $region36: #{tpu_custom_call.1} parent=31 // pred_fallthru
          _
      $region32: #{tpu_custom_call.1} parent=5 // pred_fallthru
        _
      %p213 = scmp.le.s32.totalorder 1, %s16
      %p214 = scmp.lt.s32.totalorder %s16, 3
      %p215 = pnand %p213, %p214
      %p216 = pneg %p215
      // Predicated region
      $region37: #{tpu_custom_call.1} parent=5 // pred_check
        _
      $region38: #{tpu_custom_call.1} parent=5 // pred_check_branch
        %218 = sbr.rel (%p215) target = $region40
      $region39: #{tpu_custom_call.1} parent=5 // pred_region
        %s219 = ssub.s32 %s16, 1
        // Predicated region
        $region41: #{tpu_custom_call.1} parent=39 // pred_check
          %p220 = pneg %p63
        $region42: #{tpu_custom_call.1} parent=39 // pred_check_branch
          %222 = sbr.rel (%p220) target = $region44
        $region43: #{tpu_custom_call.1} parent=39 // pred_region
          %224 = dma.done [#allocation3], 6912
        $region44: #{tpu_custom_call.1} parent=39 // pred_fallthru
          _
        // Predicated region
        $region45: #{tpu_custom_call.1} parent=39 // pred_check
          %p225 = pneg %p105
        $region46: #{tpu_custom_call.1} parent=39 // pred_check_branch
          %227 = sbr.rel (%p225) target = $region48
        $region47: #{tpu_custom_call.1} parent=39 // pred_region
          %229 = dma.done [#allocation6], 6144
        $region48: #{tpu_custom_call.1} parent=39 // pred_fallthru
          _
        %p230 = scmp.lt.s32.totalorder %s21, 1
        %s231 = scalar_select %p230, %s21, 1
        %s232 = smul.addr %s231, 3
        %s233 = smul.addr %s232, 8
        %s234 = scalar_lea.vmem %s0, %s233
        %p235 = pneg %p42
        %p236 = pneg %p39
        %p237 = pneg %p63
        %p238 = pneg %p60
        %p239 = pneg %p84
        %p240 = pneg %p81
        %p241 = pneg %p105
        %p242 = pneg %p102
        %p243 = pneg %p126
        %p244 = pneg %p123
        %p245 = pneg %p152
        %p246 = pneg %p149
        %s247 = sand.u32 %s139, 1
        %s248 = scalar_lea.sflag [#allocation4], %s247
        %s249 = sand.u32 %s139, 1
        %s250 = smul.addr %s249, 16
        %s251 = scalar_lea.vmem [#allocation7], %s250
        %p252 = scmp.lt.s32.totalorder %s21, 1
        %s253 = scalar_select %p252, %s21, 1
        %s254 = smul.addr %s253, 3
        %s255 = smul.addr %s254, 8
        %s256 = scalar_lea.vmem %s0, %s255
        %v257 = vld [vmem:[%s256] sm:$0xff]
        %v258 = vld [vmem:[%s256 + $0x8] sm:$0xff]
        %v259 = vld [vmem:[%s256 + $0x10] sm:$0x3]
        %v260 = vld [vmem:[#allocation2] sm:$0xff]
        %v261 = vld [vmem:[#allocation2 + $0x8] sm:$0xff]
        %v262 = vld [vmem:[#allocation2 + $0x10] sm:$0xff]
        %v263 = vld [vmem:[#allocation2 + $0x18] sm:$0xff]
        %v264 = vld [vmem:[#allocation2 + $0x20] sm:$0xff]
        %v265 = vld [vmem:[#allocation2 + $0x28] sm:$0xff]
        %v266 = vld [vmem:[#allocation2 + $0x30] sm:$0xff]
        %v267 = vld [vmem:[#allocation2 + $0x38] sm:$0xff]
        %v268 = vld [vmem:[#allocation2 + $0x40] sm:$0xff]
        %v269 = vld [vmem:[#allocation2 + $0x48] sm:$0xff]
        %v270 = vld [vmem:[#allocation2 + $0x50] sm:$0xff]
        %v271 = vld [vmem:[#allocation2 + $0x58] sm:$0xff]
        %v272 = vld [vmem:[#allocation2 + $0x60] sm:$0xff]
        %v273 = vld [vmem:[#allocation2 + $0x68] sm:$0xff]
        %v274 = vld [vmem:[#allocation2 + $0x70] sm:$0xff]
        %v275 = vld [vmem:[#allocation2 + $0x78] sm:$0xff]
        %v276 = vld [vmem:[#allocation2 + $0x80] sm:$0xff]
        %v277 = vld [vmem:[#allocation2 + $0x88] sm:$0xff]
        %s278 = scalar_lea.vmem [#allocation2], 144
        %v279 = vld [vmem:[%s278] sm:$0xff]
        %v280 = vld [vmem:[%s278 + $0x8] sm:$0xff]
        %v281 = vld [vmem:[%s278 + $0x10] sm:$0xff]
        %v282 = vld [vmem:[%s278 + $0x18] sm:$0xff]
        %v283 = vld [vmem:[%s278 + $0x20] sm:$0xff]
        %v284 = vld [vmem:[%s278 + $0x28] sm:$0xff]
        %v285 = vld [vmem:[%s278 + $0x30] sm:$0xff]
        %v286 = vld [vmem:[%s278 + $0x38] sm:$0xff]
        %v287 = vld [vmem:[%s278 + $0x40] sm:$0xff]
        %v288 = vld [vmem:[%s278 + $0x48] sm:$0xff]
        %v289 = vld [vmem:[%s278 + $0x50] sm:$0xff]
        %v290 = vld [vmem:[%s278 + $0x58] sm:$0xff]
        %v291 = vld [vmem:[%s278 + $0x60] sm:$0xff]
        %v292 = vld [vmem:[%s278 + $0x68] sm:$0xff]
        %v293 = vld [vmem:[%s278 + $0x70] sm:$0xff]
        %v294 = vld [vmem:[%s278 + $0x78] sm:$0xff]
        %v295 = vld [vmem:[%s278 + $0x80] sm:$0xff]
        %v296 = vld [vmem:[%s278 + $0x88] sm:$0xff]
        %vm300 = vcmask 1046528
        %v301 = vrot.slane %v257, 1
        %v302 = vrot.slane %v258, 1
        %v303 = vsel %vm300, %v301, %v302
        %v304 = vrot.slane %v259, 1
        %v305 = vsel %vm300, %v302, %v304
        %vm306 = vcmask 588800
        %v307 = vsel %vm306, %v303, 0
        %v309 = vsel %vm306, %v305, 0
        %311 = vmatpush.msra.mxu0 0.0
        %312 = vmatpush.msra.mxu0 0.0
        %313 = vmatpush.msra.mxu0 0.0
        %314 = vmatpush.msra.mxu0 0.0
        %315 = vmatpush.msra.mxu0 0.0
        %316 = vmatpush.msra.mxu0 0.0
        %317 = vmatpush.msra.mxu0 0.0
        %318 = vmatpush.msra.mxu0 %v295
        %319 = vmatpush.msra.mxu0 %v293
        %320 = vmatpush.msra.mxu0 %v291
        %321 = vmatpush.msra.mxu0 %v289
        %322 = vmatpush.msra.mxu0 %v287
        %323 = vmatpush.msra.mxu0 %v285
        %324 = vmatpush.msra.mxu0 %v283
        %325 = vmatpush.msra.mxu0 %v281
        %326 = vmatpush.msra.mxu0 %v279
        %327 = vmatmul.f32.gmra.mxu0 %v307
        %v328 = vpop.f32.mrf.mxu0
        %v329 = vadd.f32 0.0, %v328
        %330 = vmatmul.f32.gmra.mxu0 %v309
        %v331 = vpop.f32.mrf.mxu0
        %v332 = vadd.f32 0.0, %v331
        %333 = vdwg.mxu0
        %334 = vmatpush.msra.mxu0 0.0
        %335 = vmatpush.msra.mxu0 0.0
        %336 = vmatpush.msra.mxu0 0.0
        %337 = vmatpush.msra.mxu0 0.0
        %338 = vmatpush.msra.mxu0 0.0
        %339 = vmatpush.msra.mxu0 0.0
        %340 = vmatpush.msra.mxu0 0.0
        %341 = vmatpush.msra.mxu0 %v296
        %342 = vmatpush.msra.mxu0 %v294
        %343 = vmatpush.msra.mxu0 %v292
        %344 = vmatpush.msra.mxu0 %v290
        %345 = vmatpush.msra.mxu0 %v288
        %346 = vmatpush.msra.mxu0 %v286
        %347 = vmatpush.msra.mxu0 %v284
        %348 = vmatpush.msra.mxu0 %v282
        %349 = vmatpush.msra.mxu0 %v280
        %350 = vmatmul.f32.gmra.mxu0 %v307
        %v351 = vpop.f32.mrf.mxu0
        %v352 = vadd.f32 0.0, %v351
        %353 = vmatmul.f32.gmra.mxu0 %v309
        %v354 = vpop.f32.mrf.mxu0
        %v355 = vadd.f32 0.0, %v354
        %356 = vdwg.mxu0
        %v357 = vsel %vm306, %v257, 0
        %v359 = vsel %vm306, %v258, 0
        %361 = vmatpush.msra.mxu0 0.0
        %362 = vmatpush.msra.mxu0 0.0
        %363 = vmatpush.msra.mxu0 0.0
        %364 = vmatpush.msra.mxu0 0.0
        %365 = vmatpush.msra.mxu0 0.0
        %366 = vmatpush.msra.mxu0 0.0
        %367 = vmatpush.msra.mxu0 0.0
        %368 = vmatpush.msra.mxu0 %v276
        %369 = vmatpush.msra.mxu0 %v274
        %370 = vmatpush.msra.mxu0 %v272
        %371 = vmatpush.msra.mxu0 %v270
        %372 = vmatpush.msra.mxu0 %v268
        %373 = vmatpush.msra.mxu0 %v266
        %374 = vmatpush.msra.mxu0 %v264
        %375 = vmatpush.msra.mxu0 %v262
        %376 = vmatpush.msra.mxu0 %v260
        %377 = vmatmul.f32.gmra.mxu0 %v357
        %v378 = vpop.f32.mrf.mxu0
        %v379 = vadd.f32 %v329, %v378
        %380 = vmatmul.f32.gmra.mxu0 %v359
        %v381 = vpop.f32.mrf.mxu0
        %v382 = vadd.f32 %v332, %v381
        %383 = vdwg.mxu0
        %384 = vmatpush.msra.mxu0 0.0
        %385 = vmatpush.msra.mxu0 0.0
        %386 = vmatpush.msra.mxu0 0.0
        %387 = vmatpush.msra.mxu0 0.0
        %388 = vmatpush.msra.mxu0 0.0
        %389 = vmatpush.msra.mxu0 0.0
        %390 = vmatpush.msra.mxu0 0.0
        %391 = vmatpush.msra.mxu0 %v277
        %392 = vmatpush.msra.mxu0 %v275
        %393 = vmatpush.msra.mxu0 %v273
        %394 = vmatpush.msra.mxu0 %v271
        %395 = vmatpush.msra.mxu0 %v269
        %396 = vmatpush.msra.mxu0 %v267
        %397 = vmatpush.msra.mxu0 %v265
        %398 = vmatpush.msra.mxu0 %v263
        %399 = vmatpush.msra.mxu0 %v261
        %400 = vmatmul.f32.gmra.mxu0 %v357
        %v401 = vpop.f32.mrf.mxu0
        %v402 = vadd.f32 %v352, %v401
        %403 = vmatmul.f32.gmra.mxu0 %v359
        %v404 = vpop.f32.mrf.mxu0
        %v405 = vadd.f32 %v355, %v404
        %406 = vdwg.mxu0
        %s407 = scalar_lea.vmem [#allocation2], 288
        %v408 = vld [vmem:[%s407] sm:$0xff]
        %v409 = vld [vmem:[%s407 + $0x8] sm:$0xff]
        %v410 = vld [vmem:[%s407 + $0x10] sm:$0xff]
        %v411 = vld [vmem:[%s407 + $0x18] sm:$0xff]
        %v412 = vld [vmem:[%s407 + $0x20] sm:$0xff]
        %v413 = vld [vmem:[%s407 + $0x28] sm:$0xff]
        %v414 = vld [vmem:[%s407 + $0x30] sm:$0xff]
        %v415 = vld [vmem:[%s407 + $0x38] sm:$0xff]
        %v416 = vld [vmem:[%s407 + $0x40] sm:$0xff]
        %v417 = vld [vmem:[%s407 + $0x48] sm:$0xff]
        %v418 = vld [vmem:[%s407 + $0x50] sm:$0xff]
        %v419 = vld [vmem:[%s407 + $0x58] sm:$0xff]
        %v420 = vld [vmem:[%s407 + $0x60] sm:$0xff]
        %v421 = vld [vmem:[%s407 + $0x68] sm:$0xff]
        %v422 = vld [vmem:[%s407 + $0x70] sm:$0xff]
        %v423 = vld [vmem:[%s407 + $0x78] sm:$0xff]
        %v424 = vld [vmem:[%s407 + $0x80] sm:$0xff]
        %v425 = vld [vmem:[%s407 + $0x88] sm:$0xff]
        %vm426 = vcmask 1045504
        %v427 = vrot.slane %v257, 2
        %v428 = vrot.slane %v258, 2
        %v429 = vsel %vm426, %v427, %v428
        %v430 = vrot.slane %v259, 2
        %v431 = vsel %vm426, %v428, %v430
        %v432 = vsel %vm306, %v429, 0
        %v434 = vsel %vm306, %v431, 0
        %436 = vmatpush.msra.mxu0 0.0
        %437 = vmatpush.msra.mxu0 0.0
        %438 = vmatpush.msra.mxu0 0.0
        %439 = vmatpush.msra.mxu0 0.0
        %440 = vmatpush.msra.mxu0 0.0
        %441 = vmatpush.msra.mxu0 0.0
        %442 = vmatpush.msra.mxu0 0.0
        %443 = vmatpush.msra.mxu0 %v424
        %444 = vmatpush.msra.mxu0 %v422
        %445 = vmatpush.msra.mxu0 %v420
        %446 = vmatpush.msra.mxu0 %v418
        %447 = vmatpush.msra.mxu0 %v416
        %448 = vmatpush.msra.mxu0 %v414
        %449 = vmatpush.msra.mxu0 %v412
        %450 = vmatpush.msra.mxu0 %v410
        %451 = vmatpush.msra.mxu0 %v408
        %452 = vmatmul.f32.gmra.mxu0 %v432
        %v453 = vpop.f32.mrf.mxu0
        %v454 = vadd.f32 0.0, %v453
        %455 = vmatmul.f32.gmra.mxu0 %v434
        %v456 = vpop.f32.mrf.mxu0
        %v457 = vadd.f32 0.0, %v456
        %458 = vdwg.mxu0
        %459 = vmatpush.msra.mxu0 0.0
        %460 = vmatpush.msra.mxu0 0.0
        %461 = vmatpush.msra.mxu0 0.0
        %462 = vmatpush.msra.mxu0 0.0
        %463 = vmatpush.msra.mxu0 0.0
        %464 = vmatpush.msra.mxu0 0.0
        %465 = vmatpush.msra.mxu0 0.0
        %466 = vmatpush.msra.mxu0 %v425
        %467 = vmatpush.msra.mxu0 %v423
        %468 = vmatpush.msra.mxu0 %v421
        %469 = vmatpush.msra.mxu0 %v419
        %470 = vmatpush.msra.mxu0 %v417
        %471 = vmatpush.msra.mxu0 %v415
        %472 = vmatpush.msra.mxu0 %v413
        %473 = vmatpush.msra.mxu0 %v411
        %474 = vmatpush.msra.mxu0 %v409
        %475 = vmatmul.f32.gmra.mxu0 %v432
        %v476 = vpop.f32.mrf.mxu0
        %v477 = vadd.f32 0.0, %v476
        %478 = vmatmul.f32.gmra.mxu0 %v434
        %v479 = vpop.f32.mrf.mxu0
        %v480 = vadd.f32 0.0, %v479
        %481 = vdwg.mxu0
        %v482 = vadd.f32 %v379, %v454
        %v483 = vadd.f32 %v402, %v477
        %v484 = vadd.f32 %v382, %v457
        %v485 = vadd.f32 %v405, %v480
        %v486 = vld [vmem:[%s2] sm:$0x1]
        %v488 = vperm.slane %v486, 0
        %v490 = vadd.f32 %v482, %v488
        %v491 = vadd.f32 %v484, %v488
        %v492 = vmax.f32 %v490, 0.0
        %v493 = vmax.f32 %v491, 0.0
        %v494 = vlaneseq
        %v495 = vshrl.u32 %v494, 7
        %v496 = vadd.s32 %v495, 8
        %v497 = vlaneseq
        %v498 = vand.u32 %v497, 127
        %v499 = vsub.s32 %v495, 1
        %v500 = vsub.s32 %v496, 1
        %vm501 = vcmp.eq.s32.totalorder %v498, %v499
        %vm502 = vcmp.eq.s32.totalorder %v498, %v500
        %v503 = vsel %vm501, 1, 0
        %v504 = vsel %vm502, 1, 0
        %v505 = vcvt.s32.f32 %v503
        %v506 = vcvt.s32.f32 %v504
        %v507 = vadd.s32 %v495, 1
        %v508 = vadd.s32 %v496, 1
        %vm509 = vcmp.eq.s32.totalorder %v498, %v507
        %vm510 = vcmp.eq.s32.totalorder %v498, %v508
        %v511 = vsel %vm509, 1, 0
        %v512 = vsel %vm510, 1, 0
        %v513 = vcvt.s32.f32 %v511
        %v514 = vcvt.s32.f32 %v512
        %s515 = scalar_lea.vmem [#allocation5], 128
        %v516 = vld [vmem:[%s515] sm:$0xff]
        %v517 = vld [vmem:[%s515 + $0x8] sm:$0xff]
        %v518 = vld [vmem:[%s515 + $0x10] sm:$0xff]
        %v519 = vld [vmem:[%s515 + $0x18] sm:$0xff]
        %v520 = vld [vmem:[%s515 + $0x20] sm:$0xff]
        %v521 = vld [vmem:[%s515 + $0x28] sm:$0xff]
        %v522 = vld [vmem:[%s515 + $0x30] sm:$0xff]
        %v523 = vld [vmem:[%s515 + $0x38] sm:$0xff]
        %v524 = vld [vmem:[%s515 + $0x40] sm:$0xff]
        %v525 = vld [vmem:[%s515 + $0x48] sm:$0xff]
        %v526 = vld [vmem:[%s515 + $0x50] sm:$0xff]
        %v527 = vld [vmem:[%s515 + $0x58] sm:$0xff]
        %v528 = vld [vmem:[%s515 + $0x60] sm:$0xff]
        %v529 = vld [vmem:[%s515 + $0x68] sm:$0xff]
        %v530 = vld [vmem:[%s515 + $0x70] sm:$0xff]
        %v531 = vld [vmem:[%s515 + $0x78] sm:$0xff]
        %vm532 = vcmask 130048
        %v534 = vsel %vm532, %v505, 0
        %v537 = vsel %vm532, %v506, 0
        %539 = vmatpush.msra.mxu0 0.0
        %540 = vmatpush.msra.mxu0 0.0
        %541 = vmatpush.msra.mxu0 0.0
        %542 = vmatpush.msra.mxu0 0.0
        %543 = vmatpush.msra.mxu0 0.0
        %544 = vmatpush.msra.mxu0 0.0
        %545 = vmatpush.msra.mxu0 0.0
        %546 = vmatpush.msra.mxu0 0.0
        %547 = vmatpush.msra.mxu0 0.0
        %548 = vmatpush.msra.mxu0 0.0
        %549 = vmatpush.msra.mxu0 0.0
        %550 = vmatpush.msra.mxu0 0.0
        %551 = vmatpush.msra.mxu0 0.0
        %552 = vmatpush.msra.mxu0 0.0
        %553 = vmatpush.msra.mxu0 %v493
        %554 = vmatpush.msra.mxu0 %v492
        %555 = vmatmul.f32.gmra.mxu0 %v534
        %v556 = vpop.f32.mrf.mxu0
        %v557 = vadd.f32 0.0, %v556
        %558 = vmatmul.f32.gmra.mxu0 %v537
        %v559 = vpop.f32.mrf.mxu0
        %v560 = vadd.f32 0.0, %v559
        %561 = vdwg.mxu0
        %v562 = vld [vmem:[#allocation5] sm:$0xff]
        %v563 = vld [vmem:[#allocation5 + $0x8] sm:$0xff]
        %v564 = vld [vmem:[#allocation5 + $0x10] sm:$0xff]
        %v565 = vld [vmem:[#allocation5 + $0x18] sm:$0xff]
        %v566 = vld [vmem:[#allocation5 + $0x20] sm:$0xff]
        %v567 = vld [vmem:[#allocation5 + $0x28] sm:$0xff]
        %v568 = vld [vmem:[#allocation5 + $0x30] sm:$0xff]
        %v569 = vld [vmem:[#allocation5 + $0x38] sm:$0xff]
        %v570 = vld [vmem:[#allocation5 + $0x40] sm:$0xff]
        %v571 = vld [vmem:[#allocation5 + $0x48] sm:$0xff]
        %v572 = vld [vmem:[#allocation5 + $0x50] sm:$0xff]
        %v573 = vld [vmem:[#allocation5 + $0x58] sm:$0xff]
        %v574 = vld [vmem:[#allocation5 + $0x60] sm:$0xff]
        %v575 = vld [vmem:[#allocation5 + $0x68] sm:$0xff]
        %v576 = vld [vmem:[#allocation5 + $0x70] sm:$0xff]
        %v577 = vld [vmem:[#allocation5 + $0x78] sm:$0xff]
        %578 = vmatpush.msra.mxu0 %v577
        %579 = vmatpush.msra.mxu0 %v576
        %580 = vmatpush.msra.mxu0 %v575
        %581 = vmatpush.msra.mxu0 %v574
        %582 = vmatpush.msra.mxu0 %v573
        %583 = vmatpush.msra.mxu0 %v572
        %584 = vmatpush.msra.mxu0 %v571
        %585 = vmatpush.msra.mxu0 %v570
        %586 = vmatpush.msra.mxu0 %v569
        %587 = vmatpush.msra.mxu0 %v568
        %588 = vmatpush.msra.mxu0 %v567
        %589 = vmatpush.msra.mxu0 %v566
        %590 = vmatpush.msra.mxu0 %v565
        %591 = vmatpush.msra.mxu0 %v564
        %592 = vmatpush.msra.mxu0 %v563
        %593 = vmatpush.msra.mxu0 %v562
        %594 = vmatmul.f32.gmra.mxu0 %v557
        %v595 = vpop.f32.mrf.mxu0
        %v596 = vadd.f32 0.0, %v595
        %597 = vmatmul.f32.gmra.mxu0 %v560
        %v598 = vpop.f32.mrf.mxu0
        %v599 = vadd.f32 0.0, %v598
        %600 = vdwg.mxu0
        %601 = vmatpush.msra.mxu0 %v531
        %602 = vmatpush.msra.mxu0 %v530
        %603 = vmatpush.msra.mxu0 %v529
        %604 = vmatpush.msra.mxu0 %v528
        %605 = vmatpush.msra.mxu0 %v527
        %606 = vmatpush.msra.mxu0 %v526
        %607 = vmatpush.msra.mxu0 %v525
        %608 = vmatpush.msra.mxu0 %v524
        %609 = vmatpush.msra.mxu0 %v523
        %610 = vmatpush.msra.mxu0 %v522
        %611 = vmatpush.msra.mxu0 %v521
        %612 = vmatpush.msra.mxu0 %v520
        %613 = vmatpush.msra.mxu0 %v519
        %614 = vmatpush.msra.mxu0 %v518
        %615 = vmatpush.msra.mxu0 %v517
        %616 = vmatpush.msra.mxu0 %v516
        %617 = vmatmul.f32.gmra.mxu0 %v492
        %v618 = vpop.f32.mrf.mxu0
        %v619 = vadd.f32 %v596, %v618
        %620 = vmatmul.f32.gmra.mxu0 %v493
        %v621 = vpop.f32.mrf.mxu0
        %v622 = vadd.f32 %v599, %v621
        %623 = vdwg.mxu0
        %v625 = vsel %vm532, %v513, 0
        %v628 = vsel %vm532, %v514, 0
        %630 = vmatpush.msra.mxu0 0.0
        %631 = vmatpush.msra.mxu0 0.0
        %632 = vmatpush.msra.mxu0 0.0
        %633 = vmatpush.msra.mxu0 0.0
        %634 = vmatpush.msra.mxu0 0.0
        %635 = vmatpush.msra.mxu0 0.0
        %636 = vmatpush.msra.mxu0 0.0
        %637 = vmatpush.msra.mxu0 0.0
        %638 = vmatpush.msra.mxu0 0.0
        %639 = vmatpush.msra.mxu0 0.0
        %640 = vmatpush.msra.mxu0 0.0
        %641 = vmatpush.msra.mxu0 0.0
        %642 = vmatpush.msra.mxu0 0.0
        %643 = vmatpush.msra.mxu0 0.0
        %644 = vmatpush.msra.mxu0 %v493
        %645 = vmatpush.msra.mxu0 %v492
        %646 = vmatmul.f32.gmra.mxu0 %v625
        %v647 = vpop.f32.mrf.mxu0
        %v648 = vadd.f32 0.0, %v647
        %649 = vmatmul.f32.gmra.mxu0 %v628
        %v650 = vpop.f32.mrf.mxu0
        %v651 = vadd.f32 0.0, %v650
        %652 = vdwg.mxu0
        %s653 = scalar_lea.vmem [#allocation5], 256
        %v654 = vld [vmem:[%s653] sm:$0xff]
        %v655 = vld [vmem:[%s653 + $0x8] sm:$0xff]
        %v656 = vld [vmem:[%s653 + $0x10] sm:$0xff]
        %v657 = vld [vmem:[%s653 + $0x18] sm:$0xff]
        %v658 = vld [vmem:[%s653 + $0x20] sm:$0xff]
        %v659 = vld [vmem:[%s653 + $0x28] sm:$0xff]
        %v660 = vld [vmem:[%s653 + $0x30] sm:$0xff]
        %v661 = vld [vmem:[%s653 + $0x38] sm:$0xff]
        %v662 = vld [vmem:[%s653 + $0x40] sm:$0xff]
        %v663 = vld [vmem:[%s653 + $0x48] sm:$0xff]
        %v664 = vld [vmem:[%s653 + $0x50] sm:$0xff]
        %v665 = vld [vmem:[%s653 + $0x58] sm:$0xff]
        %v666 = vld [vmem:[%s653 + $0x60] sm:$0xff]
        %v667 = vld [vmem:[%s653 + $0x68] sm:$0xff]
        %v668 = vld [vmem:[%s653 + $0x70] sm:$0xff]
        %v669 = vld [vmem:[%s653 + $0x78] sm:$0xff]
        %670 = vmatpush.msra.mxu0 %v669
        %671 = vmatpush.msra.mxu0 %v668
        %672 = vmatpush.msra.mxu0 %v667
        %673 = vmatpush.msra.mxu0 %v666
        %674 = vmatpush.msra.mxu0 %v665
        %675 = vmatpush.msra.mxu0 %v664
        %676 = vmatpush.msra.mxu0 %v663
        %677 = vmatpush.msra.mxu0 %v662
        %678 = vmatpush.msra.mxu0 %v661
        %679 = vmatpush.msra.mxu0 %v660
        %680 = vmatpush.msra.mxu0 %v659
        %681 = vmatpush.msra.mxu0 %v658
        %682 = vmatpush.msra.mxu0 %v657
        %683 = vmatpush.msra.mxu0 %v656
        %684 = vmatpush.msra.mxu0 %v655
        %685 = vmatpush.msra.mxu0 %v654
        %686 = vmatmul.f32.gmra.mxu0 %v648
        %v687 = vpop.f32.mrf.mxu0
        %v688 = vadd.f32 0.0, %v687
        %689 = vmatmul.f32.gmra.mxu0 %v651
        %v690 = vpop.f32.mrf.mxu0
        %v691 = vadd.f32 0.0, %v690
        %692 = vdwg.mxu0
        %v693 = vadd.f32 %v619, %v688
        %v694 = vadd.f32 %v622, %v691
        %v695 = vld [vmem:[%s4] sm:$0x1]
        %v697 = vperm.slane %v695, 0
        %v699 = vadd.f32 %v693, %v697
        %v700 = vadd.f32 %v694, %v697
        %v701 = vadd.f32 %v699, %v483
        %v702 = vadd.f32 %v700, %v485
        %v703 = vmax.f32 %v701, 0.0
        %v704 = vmax.f32 %v702, 0.0
        %705 = vst [vmem:[%s251] sm:$0xff] %v703
        %706 = vst [vmem:[%s251 + $0x8] sm:$0xff] %v704
        %s707 = sand.u32 %s139, 1
        %s708 = scalar_lea.sflag [#allocation4], %s707
        %s709 = sand.u32 %s139, 1
        %s710 = smul.addr %s709, 16
        %s711 = scalar_lea.vmem [#allocation7], %s710
        // Predicated region
        $region49: #{tpu_custom_call.1} parent=39 // pred_check
          %p712 = pneg %p149
        $region50: #{tpu_custom_call.1} parent=39 // pred_check_branch
          %714 = sbr.rel (%p712) target = $region52
        $region51: #{tpu_custom_call.1} parent=39 // pred_region
          %716 = vsyncadd %s708, 0
          %s717 = smul.addr %s21, 2
          %s718 = smul.addr %s717, 8
          %s719 = scalar_lea.hbm %s5, %s718
          %s720 = sshll.u32 %s711, 4
          %s721 = int_to_ptr.vmem [resolvable:$true] %s720
          %s722 = sshll.u32 %s719, 4
          %s723 = int_to_ptr.hbm [resolvable:$true] %s722
          %728 = dma.vmem_to_hbm [thread:$0]  %s721, 256, %s723, %s708, 128, 128, 8
        $region52: #{tpu_custom_call.1} parent=39 // pred_fallthru
          _
      $region40: #{tpu_custom_call.1} parent=5 // pred_fallthru
        _
      %p729 = scmp.le.s32.totalorder 2, %s16
      // Predicated region
      $region53: #{tpu_custom_call.1} parent=5 // pred_check
        %p730 = pneg %p729
      $region54: #{tpu_custom_call.1} parent=5 // pred_check_branch
        %732 = sbr.rel (%p730) target = $region56
      $region55: #{tpu_custom_call.1} parent=5 // pred_region
        %s733 = ssub.s32 %s16, 2
        // Predicated region
        $region57: #{tpu_custom_call.1} parent=55 // pred_check
          %p734 = pneg %p155
        $region58: #{tpu_custom_call.1} parent=55 // pred_check_branch
          %736 = sbr.rel (%p734) target = $region60
        $region59: #{tpu_custom_call.1} parent=55 // pred_region
          %s737 = sand.u32 %s140, 1
          %s738 = scalar_lea.sflag [#allocation4], %s737
          %s739 = sand.u32 %s140, 1
          %s740 = smul.addr %s739, 16
          %s741 = scalar_lea.vmem [#allocation7], %s740
          %743 = dma.done %s738, 256
        $region60: #{tpu_custom_call.1} parent=55 // pred_fallthru
          _
      $region56: #{tpu_custom_call.1} parent=5 // pred_fallthru
        _
    $region6: #{tpu_custom_call.1} parent=1 // loop_footer
      %s20 = sadd.s32 1, %s16
    $region7: #{tpu_custom_call.1} parent=1 // loop_footer_branch
      %15 = sbr.rel target = $region3
    $region8: #{tpu_custom_call.1} parent=1 // loop_exit
      _
    %744 = vsyncpa [#allocation3], 1
    %s745 = scalar_lea.sflag [#allocation3], 1
    %746 = vsyncpa %s745, 1
    %747 = vsyncpa [#allocation6], 1
    %748 = vsyncpa [#allocation4], 1
    %s749 = scalar_lea.sflag [#allocation4], 1
    %750 = vsyncpa %s749, 1

</llo_original>
